<compile_context>
chip_gen: v5e
topology: v5e:2x2
jax: 0.10.0
libtpu: 0.0.40
codegen_flags: <defaults>
</compile_context>

<pallas_src>
import jax
import jax.numpy as jnp
from jax import lax
from jax.experimental import pallas as pl
from jax.experimental.pallas import tpu as pltpu

EPS = 1e-5


def _ibn_kernel(x_ref, g_ref, b_ref, bn_mask_ref, o_ref):
    # x_ref: (N, Ct, HW) block in VMEM.
    n, _, hw = x_ref.shape                     # static python ints
    x = x_ref[...]                             # f32 already (wrapper casts)

    # ---- first sweep: per-(n, c) spatial sums (lane reduction) ----
    s1 = jnp.sum(x, axis=-1, keepdims=True)                    # (N, Ct, 1)
    mu_in = s1 * (1.0 / hw)                                    # IN mean per (n, c)
    mu_bn = jnp.sum(s1, axis=0, keepdims=True) * (1.0 / (n * hw))  # BN mean per c

    mask = bn_mask_ref[...][None, :, :]        # (1, Ct, 1); 1.0 -> BN channel
    mu = mu_in + mask * (mu_bn - mu_in)        # blended per-channel mean (N, Ct, 1)

    # ---- second sweep: centered tensor reused for variance and normalization ----
    xc = x - mu                                                # full-tensor pass
    s2 = jnp.sum(xc * xc, axis=-1, keepdims=True)              # (N, Ct, 1)
    var_in = s2 * (1.0 / hw)
    var_bn = jnp.sum(s2, axis=0, keepdims=True) * (1.0 / (n * hw))
    var = var_in + mask * (var_bn - var_in)                    # blended biased var

    # ---- fold affine into a single scale (beta is the shift since xc is centered)
    gamma = g_ref[...][None, :, :]             # (1, Ct, 1)
    beta = b_ref[...][None, :, :]
    scale = lax.rsqrt(var + EPS) * gamma       # small (N, Ct, 1) tensor math

    # single unmasked full-tile store
    o_ref[...] = (xc * scale + beta).astype(o_ref.dtype)


def _choose_channel_block(n, c, hw, itemsize=4, target_bytes=2 * 1024 * 1024):
    """Largest channel-block size Ct (multiple of 8, dividing C) whose block
    (N, Ct, HW) stays under ~2 MiB; falls back to full C when C % 8 != 0
    (the sublane-adjacent dim must be a multiple of 8 or the full extent)."""
    if c % 8 != 0:
        return c
    divisors = [d for d in range(8, c + 1, 8) if c % d == 0]
    fitting = [d for d in divisors if n * d * hw * itemsize <= target_bytes]
    return max(fitting) if fitting else min(divisors)


def ibn_forward(x_nchw, gamma_in, beta_in, gamma_bn, beta_bn):
    """x_nchw: (N, C, H, W). Returns (N, C, H, W) float32."""
    N, C, H, W = x_nchw.shape
    half1 = gamma_in.shape[0]
    half2 = gamma_bn.shape[0]
    assert half1 + half2 == C
    HW = H * W

    x3 = x_nchw.reshape(N, C, HW).astype(jnp.float32)
    gamma = jnp.concatenate([gamma_in, gamma_bn]).reshape(C, 1).astype(jnp.float32)
    beta = jnp.concatenate([beta_in, beta_bn]).reshape(C, 1).astype(jnp.float32)
    bn_mask = (jnp.arange(C) >= half1).astype(jnp.float32).reshape(C, 1)

    ct = _choose_channel_block(N, C, HW)
    grid = (C // ct,)

    out3 = pl.pallas_call(
        _ibn_kernel,
        out_shape=jax.ShapeDtypeStruct((N, C, HW), jnp.float32),
        grid=grid,
        in_specs=[
            pl.BlockSpec((N, ct, HW), lambda c: (0, c, 0)),
            pl.BlockSpec((ct, 1), lambda c: (c, 0)),
            pl.BlockSpec((ct, 1), lambda c: (c, 0)),
            pl.BlockSpec((ct, 1), lambda c: (c, 0)),
        ],
        out_specs=pl.BlockSpec((N, ct, HW), lambda c: (0, c, 0)),
        compiler_params=pltpu.CompilerParams(
            dimension_semantics=("parallel",),
            vmem_limit_bytes=32 * 1024 * 1024,
        ),
    )(x3, gamma, beta, bn_mask)

    return out3.reshape(N, C, H, W)


def _ibn_reference(x, gamma_in, beta_in, gamma_bn, beta_bn):
    """Pure-JAX reference matching PyTorch IBN forward (training mode)."""
    half1 = gamma_in.shape[0]
    x_in = x[:, :half1]
    x_bn = x[:, half1:]

    mu_i = jnp.mean(x_in, axis=(2, 3), keepdims=True)
    var_i = jnp.mean((x_in - mu_i) ** 2, axis=(2, 3), keepdims=True)
    y_in = (x_in - mu_i) / jnp.sqrt(var_i + EPS)
    y_in = y_in * gamma_in[None, :, None, None] + beta_in[None, :, None, None]

    mu_b = jnp.mean(x_bn, axis=(0, 2, 3), keepdims=True)
    var_b = jnp.mean((x_bn - mu_b) ** 2, axis=(0, 2, 3), keepdims=True)
    y_bn = (x_bn - mu_b) / jnp.sqrt(var_b + EPS)
    y_bn = y_bn * gamma_bn[None, :, None, None] + beta_bn[None, :, None, None]

    return jnp.concatenate([y_in, y_bn], axis=1)


if __name__ == "__main__":
    # IBN(planes=4): half1 = 2 (InstanceNorm2d), half2 = 2 (BatchNorm2d)
    N, C, H, W = 2, 4, 16, 16
    half1 = C // 2
    half2 = C - half1

    key = jax.random.PRNGKey(0)
    kx, k1, k2, k3, k4 = jax.random.split(key, 5)
    x = jax.random.normal(kx, (N, C, H, W), dtype=jnp.float32)
    # deterministic, non-trivial affine params (shapes per the module __init__)
    gamma_in = 1.0 + 0.1 * jax.random.normal(k1, (half1,), dtype=jnp.float32)
    beta_in = 0.1 * jax.random.normal(k2, (half1,), dtype=jnp.float32)
    gamma_bn = 1.0 + 0.1 * jax.random.normal(k3, (half2,), dtype=jnp.float32)
    beta_bn = 0.1 * jax.random.normal(k4, (half2,), dtype=jnp.float32)

    out = ibn_forward(x, gamma_in, beta_in, gamma_bn, beta_bn)
    out = jax.block_until_ready(out)

    ref = _ibn_reference(x, gamma_in, beta_in, gamma_bn, beta_bn)
    assert out.shape == (N, C, H, W)
    assert jnp.allclose(out, ref, atol=1e-4, rtol=1e-4), "mismatch vs reference"

    print("KERNEL_OK")
</pallas_src>

<mosaic_0001>
module attributes {stable_mosaic.version = 11 : i64} {
  func.func @_ibn_kernel(%arg0: i32, %arg1: memref<2x4x256xf32, #tpu.memory_space<vmem>>, %arg2: memref<4x1xf32, #tpu.memory_space<vmem>>, %arg3: memref<4x1xf32, #tpu.memory_space<vmem>>, %arg4: memref<4x1xf32, #tpu.memory_space<vmem>>, %arg5: memref<2x4x256xf32, #tpu.memory_space<vmem>>) attributes {dimension_semantics = [#tpu.dimension_semantics<parallel>], iteration_bounds = array<i64: 1>, scalar_prefetch = 0 : i64, scratch_operands = 0 : i64, tpu.core_type = #tpu.core_type<tc>, window_params = [{transform_indices = @transform_0, window_bounds = array<i64: 2, 4, 256>}, {transform_indices = @transform_1, window_bounds = array<i64: 4, 1>}, {transform_indices = @transform_2, window_bounds = array<i64: 4, 1>}, {transform_indices = @transform_3, window_bounds = array<i64: 4, 1>}, {transform_indices = @transform_4, window_bounds = array<i64: 2, 4, 256>}]} {
    %c0 = arith.constant 0 : index
    %c0_0 = arith.constant 0 : index
    %c0_1 = arith.constant 0 : index
    %0 = vector.load %arg1[%c0, %c0_0, %c0_1] : memref<2x4x256xf32, #tpu.memory_space<vmem>>, vector<2x4x256xf32>
    %cst = arith.constant dense<0.000000e+00> : vector<2x4xf32>
    %1 = vector.multi_reduction <add>, %0, %cst [2] : vector<2x4x256xf32> to vector<2x4xf32>
    %2 = vector.shape_cast %1 : vector<2x4xf32> to vector<2x4x1xf32>
    %cst_2 = arith.constant 3.906250e-03 : f32
    %3 = vector.broadcast %cst_2 : f32 to vector<2x4x1xf32>
    %4 = arith.mulf %2, %3 : vector<2x4x1xf32>
    %cst_3 = arith.constant dense<0.000000e+00> : vector<4x1xf32>
    %5 = vector.multi_reduction <add>, %2, %cst_3 [0] : vector<2x4x1xf32> to vector<4x1xf32>
    %6 = vector.shape_cast %5 : vector<4x1xf32> to vector<1x4x1xf32>
    %cst_4 = arith.constant 0.001953125 : f32
    %7 = vector.broadcast %cst_4 : f32 to vector<1x4x1xf32>
    %8 = arith.mulf %6, %7 : vector<1x4x1xf32>
    %c0_5 = arith.constant 0 : index
    %c0_6 = arith.constant 0 : index
    %9 = vector.load %arg4[%c0_5, %c0_6] : memref<4x1xf32, #tpu.memory_space<vmem>>, vector<4x1xf32>
    %10 = vector.shape_cast %9 : vector<4x1xf32> to vector<1x4x1xf32>
    %11 = vector.broadcast %8 : vector<1x4x1xf32> to vector<2x4x1xf32>
    %12 = arith.subf %11, %4 : vector<2x4x1xf32>
    %13 = vector.broadcast %10 : vector<1x4x1xf32> to vector<2x4x1xf32>
    %14 = arith.mulf %13, %12 : vector<2x4x1xf32>
    %15 = arith.addf %4, %14 : vector<2x4x1xf32>
    %16 = vector.broadcast %15 : vector<2x4x1xf32> to vector<2x4x256xf32>
    %17 = arith.subf %0, %16 : vector<2x4x256xf32>
    %18 = arith.mulf %17, %17 : vector<2x4x256xf32>
    %cst_7 = arith.constant dense<0.000000e+00> : vector<2x4xf32>
    %19 = vector.multi_reduction <add>, %18, %cst_7 [2] : vector<2x4x256xf32> to vector<2x4xf32>
    %20 = vector.shape_cast %19 : vector<2x4xf32> to vector<2x4x1xf32>
    %cst_8 = arith.constant 3.906250e-03 : f32
    %21 = vector.broadcast %cst_8 : f32 to vector<2x4x1xf32>
    %22 = arith.mulf %20, %21 : vector<2x4x1xf32>
    %cst_9 = arith.constant dense<0.000000e+00> : vector<4x1xf32>
    %23 = vector.multi_reduction <add>, %20, %cst_9 [0] : vector<2x4x1xf32> to vector<4x1xf32>
    %24 = vector.shape_cast %23 : vector<4x1xf32> to vector<1x4x1xf32>
    %cst_10 = arith.constant 0.001953125 : f32
    %25 = vector.broadcast %cst_10 : f32 to vector<1x4x1xf32>
    %26 = arith.mulf %24, %25 : vector<1x4x1xf32>
    %27 = vector.broadcast %26 : vector<1x4x1xf32> to vector<2x4x1xf32>
    %28 = arith.subf %27, %22 : vector<2x4x1xf32>
    %29 = vector.broadcast %10 : vector<1x4x1xf32> to vector<2x4x1xf32>
    %30 = arith.mulf %29, %28 : vector<2x4x1xf32>
    %31 = arith.addf %22, %30 : vector<2x4x1xf32>
    %c0_11 = arith.constant 0 : index
    %c0_12 = arith.constant 0 : index
    %32 = vector.load %arg2[%c0_11, %c0_12] : memref<4x1xf32, #tpu.memory_space<vmem>>, vector<4x1xf32>
    %33 = vector.shape_cast %32 : vector<4x1xf32> to vector<1x4x1xf32>
    %c0_13 = arith.constant 0 : index
    %c0_14 = arith.constant 0 : index
    %34 = vector.load %arg3[%c0_13, %c0_14] : memref<4x1xf32, #tpu.memory_space<vmem>>, vector<4x1xf32>
    %35 = vector.shape_cast %34 : vector<4x1xf32> to vector<1x4x1xf32>
    %cst_15 = arith.constant 9.99999974E-6 : f32
    %36 = vector.broadcast %cst_15 : f32 to vector<2x4x1xf32>
    %37 = arith.addf %31, %36 : vector<2x4x1xf32>
    %38 = math.rsqrt %37 : vector<2x4x1xf32>
    %39 = vector.broadcast %33 : vector<1x4x1xf32> to vector<2x4x1xf32>
    %40 = arith.mulf %38, %39 : vector<2x4x1xf32>
    %41 = vector.broadcast %40 : vector<2x4x1xf32> to vector<2x4x256xf32>
    %42 = arith.mulf %17, %41 : vector<2x4x256xf32>
    %43 = vector.broadcast %35 : vector<1x4x1xf32> to vector<2x4x256xf32>
    %44 = arith.addf %42, %43 : vector<2x4x256xf32>
    %c0_16 = arith.constant 0 : index
    %c0_17 = arith.constant 0 : index
    %c0_18 = arith.constant 0 : index
    %45 = vector.load %arg5[%c0_16, %c0_17, %c0_18] : memref<2x4x256xf32, #tpu.memory_space<vmem>>, vector<2x4x256xf32>
    tpu.vector_store %arg5[%c0_16, %c0_17, %c0_18], %44 {strides = array<i32>} : memref<2x4x256xf32, #tpu.memory_space<vmem>>, vector<2x4x256xf32>,
    return
  }
  func.func @transform_0(%arg0: i32) -> (i32, i32, i32) {
    %c0_i32 = arith.constant 0 : i32
    %c0_i32_0 = arith.constant 0 : i32
    %c0_i32_1 = arith.constant 0 : i32
    return %c0_i32, %arg0, %c0_i32_0 : i32, i32, i32
  }
  func.func @transform_1(%arg0: i32) -> (i32, i32) {
    %c0_i32 = arith.constant 0 : i32
    %c0_i32_0 = arith.constant 0 : i32
    return %arg0, %c0_i32 : i32, i32
  }
  func.func @transform_2(%arg0: i32) -> (i32, i32) {
    %c0_i32 = arith.constant 0 : i32
    %c0_i32_0 = arith.constant 0 : i32
    return %arg0, %c0_i32 : i32, i32
  }
  func.func @transform_3(%arg0: i32) -> (i32, i32) {
    %c0_i32 = arith.constant 0 : i32
    %c0_i32_0 = arith.constant 0 : i32
    return %arg0, %c0_i32 : i32, i32
  }
  func.func @transform_4(%arg0: i32) -> (i32, i32, i32) {
    %c0_i32 = arith.constant 0 : i32
    %c0_i32_0 = arith.constant 0 : i32
    %c0_i32_1 = arith.constant 0 : i32
    return %c0_i32, %arg0, %c0_i32_0 : i32, i32, i32
  }
}

</mosaic_0001>

<llo_original>
// kernel: tpu_custom_call.1
$region0: #{tpu_custom_call.1}
  #allocation0 [shape = 'u32[]', space=smem, size = 0x4, offset = 0x4, fixed_abs, tag = 'smem constant byte address 0x4 - core index']
  #allocation1 [shape = 'u32[72,128]{1,0:T(1,128)}', space=vmem, size = 0x9000, scoped, tag = 'internal scratch']
  %s0 = inlined_call_operand.hbm [shape: f32[2,4,256], index: 0, kind: input, shape index: {}]
  %s1 = inlined_call_operand.vmem [shape: f32[4,1], index: 1, kind: input, shape index: {}]
  %s2 = inlined_call_operand.vmem [shape: f32[4,1], index: 2, kind: input, shape index: {}]
  %s3 = inlined_call_operand.vmem [shape: f32[4,1], index: 3, kind: input, shape index: {}]
  %s4 = inlined_call_operand.hbm [shape: f32[2,4,256], index: 4, kind: output, shape index: {}]
  %s5 = sld [smem:[#allocation0]]
  $region30: #{tpu_custom_call.1} parent=0
    _
  %s7 = ssub.s32 1, %s5
  %s8 = scalar_select 0, %s7, %s5
  $region1: #{tpu_custom_call.1} parent=0
    #allocation2 [shape = 'u8[8192]{0}', space=vmem, size = 0x2000, scoped, tag = 'input window, operand 0, single buffered']
    #allocation3 [shape = 's32[1]{0}', space=sflag, size = 0x4, scoped, tag = 'scoped memory for tpu_custom_call.1']
    #allocation4 [shape = 's32[1]{0}', space=sflag, size = 0x4, scoped, tag = 'scoped memory for tpu_custom_call.1']
    #allocation5 [shape = 'u8[8192]{0}', space=vmem, size = 0x2000, scoped, tag = 'output window, operand 0, single buffered']
    %9 = vsyncpa [#allocation3], 0
    %10 = vsyncpa [#allocation4], 0
    // Predicated region
    $region2: #{tpu_custom_call.1} parent=1 // pred_check
      _
    $region3: #{tpu_custom_call.1} parent=1 // pred_check_branch
      %12 = sbr.rel (0) target = $region5
    $region4: #{tpu_custom_call.1} parent=1 // pred_region
      %14 = vsyncadd [#allocation3], 0
      %s15 = sshll.u32 %s0, 4
      %s16 = int_to_ptr.hbm [resolvable:$true] %s15
      %s17 = sshll.u32 [#allocation2], 4
      %s18 = int_to_ptr.vmem [resolvable:$true] %s17
      %23 = dma.hbm_to_vmem [thread:$0]  %s16, 256, %s18, [#allocation3], 128, 128, 8
    $region5: #{tpu_custom_call.1} parent=1 // pred_fallthru
      _
    // Predicated region
    $region6: #{tpu_custom_call.1} parent=1 // pred_check
      _
    $region7: #{tpu_custom_call.1} parent=1 // pred_check_branch
      %25 = sbr.rel (0) target = $region9
    $region8: #{tpu_custom_call.1} parent=1 // pred_region
      _
    $region9: #{tpu_custom_call.1} parent=1 // pred_fallthru
      _
    // Predicated region
    $region10: #{tpu_custom_call.1} parent=1 // pred_check
      _
    $region11: #{tpu_custom_call.1} parent=1 // pred_check_branch
      %27 = sbr.rel (0) target = $region13
    $region12: #{tpu_custom_call.1} parent=1 // pred_region
      _
    $region13: #{tpu_custom_call.1} parent=1 // pred_fallthru
      _
    // Predicated region
    $region14: #{tpu_custom_call.1} parent=1 // pred_check
      _
    $region15: #{tpu_custom_call.1} parent=1 // pred_check_branch
      %29 = sbr.rel (0) target = $region17
    $region16: #{tpu_custom_call.1} parent=1 // pred_region
      _
    $region17: #{tpu_custom_call.1} parent=1 // pred_fallthru
      _
    // Predicated region
    $region18: #{tpu_custom_call.1} parent=1 // pred_check
      _
    $region19: #{tpu_custom_call.1} parent=1 // pred_check_branch
      %31 = sbr.rel (0) target = $region21
    $region20: #{tpu_custom_call.1} parent=1 // pred_region
      %33 = dma.done [#allocation3], 256
    $region21: #{tpu_custom_call.1} parent=1 // pred_fallthru
      _
    %v34 = vld [vmem:[#allocation2] sm:$0xff]
    %v35 = vld [vmem:[#allocation2 + $0x8] sm:$0xff]
    %38 = vst [vmem:[#allocation1] ss:$2 sm:$0xff] %v34
    %v39 = vld.sshfl [vmem:[#allocation1] sm:$0xff pattern:$0x75316420]
    %v40 = vld.sshfl [vmem:[#allocation1 + $0x8] sm:$0xff pattern:$0x75316420]
    %s41 = scalar_lea.vmem [#allocation1], 16
    %42 = vst [vmem:[%s41] ss:$2 sm:$0xff] %v35
    %v43 = vld.sshfl [vmem:[#allocation1 + $0x10] sm:$0xff pattern:$0x75316420]
    %v44 = vld.sshfl [vmem:[#allocation1 + $0x18] sm:$0xff pattern:$0x75316420]
    %vm49 = vcmask 1043456
    %v50 = vsel %vm49, %v39, 0.0
    %v51 = vsel %vm49, %v40, 0.0
    %v52 = vadd.f32 %v50, %v51
    %53 = vadd.xlane.f32.xlu0 %v52
    %v54 = vpop.xlane.xlu0 %53
    %v55 = vsel %vm49, %v43, 0.0
    %v56 = vsel %vm49, %v44, 0.0
    %v57 = vadd.f32 %v55, %v56
    %58 = vadd.xlane.f32.xlu0 %v57
    %v59 = vpop.xlane.xlu0 %58
    %v60 = vmul.f32 %v54, 0.00390625
    %v61 = vmul.f32 %v59, 0.00390625
    %v62 = vsel %vm49, %v54, 0.0
    %v63 = vsel %vm49, %v59, 0.0
    %v64 = vadd.f32 %v62, %v63
    %v65 = vmul.f32 %v64, 0.001953125
    %v66 = vld [vmem:[%s3] sm:$0xf]
    %v67 = vsub.f32 %v65, %v60
    %v68 = vsub.f32 %v65, %v61
    %v69 = vmul.f32 %v66, %v67
    %v70 = vmul.f32 %v66, %v68
    %v71 = vadd.f32 %v60, %v69
    %v72 = vadd.f32 %v61, %v70
    %74 = vset.pattern.permute.xlu0 0
    %75 = vperm.xlu0 %74, %v71
    %v76 = vpop.permute.xlu0 %75
    %78 = vset.pattern.permute.xlu0 0
    %79 = vperm.xlu0 %78, %v72
    %v80 = vpop.permute.xlu0 %79
    %v82 = vunpack.c.l.s4 839922192
    %v83 = vunpack.c.0.s8 %v82
    %v84 = vperm.slane %v76, %v83
    %v86 = vunpack.c.l.s4 839922192
    %v87 = vunpack.c.0.s8 %v86
    %v88 = vperm.slane %v80, %v87
    %v91 = vsub.f32 %v34, %v84
    %v92 = vsub.f32 %v35, %v88
    %v93 = vmul.f32 %v91, %v91
    %v94 = vmul.f32 %v92, %v92
    %97 = vst [vmem:[#allocation1] ss:$2 sm:$0xff] %v93
    %v98 = vld.sshfl [vmem:[#allocation1] sm:$0xff pattern:$0x75316420]
    %v99 = vld.sshfl [vmem:[#allocation1 + $0x8] sm:$0xff pattern:$0x75316420]
    %s100 = scalar_lea.vmem [#allocation1], 16
    %101 = vst [vmem:[%s100] ss:$2 sm:$0xff] %v94
    %v102 = vld.sshfl [vmem:[#allocation1 + $0x10] sm:$0xff pattern:$0x75316420]
    %v103 = vld.sshfl [vmem:[#allocation1 + $0x18] sm:$0xff pattern:$0x75316420]
    %v108 = vsel %vm49, %v98, 0.0
    %v109 = vsel %vm49, %v99, 0.0
    %v110 = vadd.f32 %v108, %v109
    %111 = vadd.xlane.f32.xlu0 %v110
    %v112 = vpop.xlane.xlu0 %111
    %v113 = vsel %vm49, %v102, 0.0
    %v114 = vsel %vm49, %v103, 0.0
    %v115 = vadd.f32 %v113, %v114
    %116 = vadd.xlane.f32.xlu0 %v115
    %v117 = vpop.xlane.xlu0 %116
    %v118 = vmul.f32 %v112, 0.00390625
    %v119 = vmul.f32 %v117, 0.00390625
    %v120 = vsel %vm49, %v112, 0.0
    %v121 = vsel %vm49, %v117, 0.0
    %v122 = vadd.f32 %v120, %v121
    %v123 = vmul.f32 %v122, 0.001953125
    %v124 = vsub.f32 %v123, %v118
    %v125 = vsub.f32 %v123, %v119
    %v126 = vmul.f32 %v66, %v124
    %v127 = vmul.f32 %v66, %v125
    %v128 = vadd.f32 %v118, %v126
    %v129 = vadd.f32 %v119, %v127
    %v130 = vld [vmem:[%s1] sm:$0xf]
    %v131 = vld [vmem:[%s2] sm:$0xf]
    %v132 = vadd.f32 %v128, 1e-05
    %v133 = vadd.f32 %v129, 1e-05
    %v134 = vrsqrt.pop %v132
    %v135 = vmul.f32 %v134, %v132
    %v136 = vmul.f32 %v135, %v134
    %v137 = vmul.f32 0.5, %v136
    %v138 = vsub.f32 1.5, %v137
    %v139 = vmul.f32 %v134, %v138
    %vm140 = vweird.f32 %v132
    %vm141 = vweird.f32 %v134
    %vm142 = vmor %vm140, %vm141
    %v143 = vsel %vm142, %v134, %v139
    %v144 = vrsqrt.pop %v133
    %v145 = vmul.f32 %v144, %v133
    %v146 = vmul.f32 %v145, %v144
    %v147 = vmul.f32 0.5, %v146
    %v148 = vsub.f32 1.5, %v147
    %v149 = vmul.f32 %v144, %v148
    %vm150 = vweird.f32 %v133
    %vm151 = vweird.f32 %v144
    %vm152 = vmor %vm150, %vm151
    %v153 = vsel %vm152, %v144, %v149
    %v154 = vmul.f32 %v143, %v130
    %v155 = vmul.f32 %v153, %v130
    %157 = vset.pattern.permute.xlu0 0
    %158 = vperm.xlu0 %157, %v154
    %v159 = vpop.permute.xlu0 %158
    %161 = vset.pattern.permute.xlu0 0
    %162 = vperm.xlu0 %161, %v155
    %v163 = vpop.permute.xlu0 %162
    %v165 = vunpack.c.l.s4 839922192
    %v166 = vunpack.c.0.s8 %v165
    %v167 = vperm.slane %v159, %v166
    %v169 = vunpack.c.l.s4 839922192
    %v170 = vunpack.c.0.s8 %v169
    %v171 = vperm.slane %v163, %v170
    %v174 = vmul.f32 %v91, %v167
    %v175 = vmul.f32 %v92, %v171
    %177 = vset.pattern.permute.xlu0 0
    %178 = vperm.xlu0 %177, %v131
    %v179 = vpop.permute.xlu0 %178
    %v181 = vunpack.c.l.s4 839922192
    %v182 = vunpack.c.0.s8 %v181
    %v183 = vperm.slane %v179, %v182
    %v185 = vadd.f32 %v174, %v183
    %v186 = vadd.f32 %v175, %v183
    %187 = vst [vmem:[#allocation5] sm:$0xff] %v185
    %188 = vst [vmem:[#allocation5 + $0x8] sm:$0xff] %v186
    // Predicated region
    $region22: #{tpu_custom_call.1} parent=1 // pred_check
      _
    $region23: #{tpu_custom_call.1} parent=1 // pred_check_branch
      %190 = sbr.rel (0) target = $region25
    $region24: #{tpu_custom_call.1} parent=1 // pred_region
      %192 = vsyncadd [#allocation4], 0
      %s193 = sshll.u32 [#allocation5], 4
      %s194 = int_to_ptr.vmem [resolvable:$true] %s193
      %s195 = sshll.u32 %s4, 4
      %s196 = int_to_ptr.hbm [resolvable:$true] %s195
      %201 = dma.vmem_to_hbm [thread:$0]  %s194, 256, %s196, [#allocation4], 128, 128, 8
    $region25: #{tpu_custom_call.1} parent=1 // pred_fallthru
      _
    // Predicated region
    $region26: #{tpu_custom_call.1} parent=1 // pred_check
      _
    $region27: #{tpu_custom_call.1} parent=1 // pred_check_branch
      %203 = sbr.rel (0) target = $region29
    $region28: #{tpu_custom_call.1} parent=1 // pred_region
      %205 = dma.done [#allocation4], 256
    $region29: #{tpu_custom_call.1} parent=1 // pred_fallthru
      _
    %206 = vsyncpa [#allocation3], 1
    %207 = vsyncpa [#allocation4], 1

</llo_original>
